<compile_context>
chip_gen: v5e
topology: v5e:2x2
jax: 0.10.0
libtpu: 0.0.40
codegen_flags: <defaults>
</compile_context>

<pallas_src>
import jax
import jax.numpy as jnp
import numpy as np
from jax.experimental import pallas as pl
from jax.experimental.pallas import tpu as pltpu


def gnn_gcn_kernel(x_ref, adj_ref, w1_ref, b1_ref, w2_ref, b2_ref, out_ref):
    """2-layer GCN forward for one batch block (one grid step)."""
    Bb, N, c_in = x_ref.shape

    adj = adj_ref[...]                                    # (Bb, N, N)
    x = x_ref[...]                                        # (Bb, N, c_in)

    # num_neighbours = adj.sum(-1); adj includes self-loops so deg >= 1.
    deg = jnp.sum(adj, axis=-1, keepdims=True)            # (Bb, N, 1)
    inv_deg = pl.reciprocal(deg, approx=False)            # exact 1/deg

    # --- GCN layer 1: aggregate (narrow c_in) -> scale -> project -> bias -> ReLU ---
    # Exact reorder of relu((adj @ (xW1+b1)) / deg): the normalized adjacency has unit
    # row sums, so the bias moves outside the aggregation.
    agg1 = jnp.einsum("bnm,bmc->bnc", adj, x,
                      preferred_element_type=jnp.float32)  # (Bb, N, c_in)
    agg1 = agg1 * inv_deg                                  # output scaling, not adj scaling
    a2d = agg1.reshape(Bb * N, c_in)                       # major-dim merge: layout no-op
    h = jnp.dot(a2d, w1_ref[...], preferred_element_type=jnp.float32) + b1_ref[...]
    h = jnp.maximum(h, 0.0)                                # ReLU; Dropout(p=0.0) is identity
    c_hidden = h.shape[-1]
    h = h.reshape(Bb, N, c_hidden)                         # major-dim split: layout no-op

    # --- GCN layer 2: aggregate (c_hidden) -> scale -> project -> bias ---
    agg2 = jnp.einsum("bnm,bmc->bnc", adj, h,
                      preferred_element_type=jnp.float32)  # (Bb, N, c_hidden)
    agg2 = agg2 * inv_deg
    g2d = agg2.reshape(Bb * N, c_hidden)
    y = jnp.dot(g2d, w2_ref[...], preferred_element_type=jnp.float32) + b2_ref[...]

    out_ref[...] = y.reshape(Bb, N, y.shape[-1]).astype(out_ref.dtype)


_VMEM_BUDGET_BYTES = 48 << 20   # conservative vs v7x's 64 MiB physical VMEM (plenty on v5e/v6e)


def _default_batch_block(B, N, c_in, c_out):
    """Largest batch block whose double-buffered footprint fits the VMEM budget; for large
    batches, cap so the grid has >=4 parallel steps (2 pipelined steps per v7x TensorCore)."""
    per_elem = 4 * N * (N + c_in + c_out)          # adj + x + out rows, f32 bytes
    bb = max(1, min(B, _VMEM_BUDGET_BYTES // (2 * per_elem)))
    if B >= 8 and bb > B // 4:
        bb = B // 4                                 # >=4 grid steps when work is plentiful
    while B % bb:                                   # round down to a divisor of B
        bb -= 1
    return bb


def gnn_forward(x, adj, w1, b1, w2, b2, *, batch_block=None, adj_buffers=2):
    """x: [B, N, c_in], adj: [B, N, N]; weights stored as (in, out) (already transposed).

    batch_block: batch elements per grid step (None = auto heuristic).
    adj_buffers: pipeline depth for the adjacency input (only applied when the grid has
                 >=3 steps and adj_buffers > 2; deepens prefetch if the adj DMA is exposed).
    """
    B, N, c_in = x.shape
    c_hidden = w1.shape[1]
    c_out = w2.shape[1]

    if batch_block is None:
        batch_block = _default_batch_block(B, N, c_in, c_out)
    assert B % batch_block == 0, "batch_block must divide the batch size"
    grid_steps = B // batch_block

    # VMEM sizing: double-buffered per-step blocks (adj + x + out) plus the resident weights.
    blk_bytes = 4 * batch_block * N * (N + c_in + c_out)
    wgt_bytes = 4 * (c_in * c_hidden + c_hidden + c_hidden * c_out + c_out)
    needed = 2 * (blk_bytes + wgt_bytes)
    assert needed <= _VMEM_BUDGET_BYTES, "batch_block too large for the 48 MiB VMEM budget"
    vmem_limit = int(min(max(needed + (4 << 20), 32 << 20), _VMEM_BUDGET_BYTES))

    # Adjacency spec: the largest per-step transfer; optionally deepen its prefetch.
    adj_spec_kwargs = {}
    if adj_buffers > 2 and grid_steps >= 3:
        adj_spec_kwargs["pipeline_mode"] = pl.Buffered(adj_buffers)
    adj_spec = pl.BlockSpec((batch_block, N, N), lambda b: (b, 0, 0), **adj_spec_kwargs)

    # Advisory cost estimate: 2 aggregations (narrow channels) + 2 projections.
    flops = 2 * B * N * (N * c_in + c_in * c_hidden + N * c_hidden + c_hidden * c_out)
    bytes_accessed = 4 * (x.size + adj.size + B * N * c_out
                          + w1.size + b1.size + w2.size + b2.size)
    cost = pl.CostEstimate(flops=flops, transcendentals=0, bytes_accessed=bytes_accessed)

    return pl.pallas_call(
        gnn_gcn_kernel,
        out_shape=jax.ShapeDtypeStruct((B, N, c_out), x.dtype),
        grid_spec=pl.GridSpec(
            grid=(grid_steps,),
            in_specs=[
                pl.BlockSpec((batch_block, N, c_in), lambda b: (b, 0, 0)),
                adj_spec,
                # Weights/biases: constant index maps -> stay resident in VMEM.
                pl.BlockSpec((c_in, c_hidden), lambda b: (0, 0)),
                pl.BlockSpec((1, c_hidden), lambda b: (0, 0)),
                pl.BlockSpec((c_hidden, c_out), lambda b: (0, 0)),
                pl.BlockSpec((1, c_out), lambda b: (0, 0)),
            ],
            out_specs=pl.BlockSpec((batch_block, N, c_out), lambda b: (b, 0, 0)),
        ),
        compiler_params=pltpu.CompilerParams(
            dimension_semantics=("parallel",),
            vmem_limit_bytes=vmem_limit,
        ),
        cost_estimate=cost,
    )(x, adj, w1, b1, w2, b2)


def _xavier_uniform(key, fan_in, fan_out, gain=1.0):
    # deterministic synthetic init (nn.Linear weight semantics, stored transposed as (in, out))
    limit = gain * np.sqrt(6.0 / (fan_in + fan_out))
    return jax.random.uniform(key, (fan_in, fan_out), jnp.float32, -limit, limit)


def _reference_forward(x, adj, w1, b1, w2, b2):
    # Faithful to the PyTorch module: project -> aggregate -> divide by num_neighbours.
    deg = jnp.sum(adj, axis=-1, keepdims=True)
    h = jnp.einsum("bni,io->bno", x, w1) + b1
    h = jnp.einsum("bnm,bmo->bno", adj, h) / deg
    h = jnp.maximum(h, 0.0)
    h2 = jnp.einsum("bni,io->bno", h, w2) + b2
    h2 = jnp.einsum("bnm,bmo->bno", adj, h2) / deg
    return h2


if __name__ == "__main__":
    B, N = 2, 16
    c_in, c_hidden, c_out = 4, 32, 8

    key = jax.random.PRNGKey(0)
    kx, kadj, kw1, kb1, kw2, kb2 = jax.random.split(key, 6)

    x = jax.random.normal(kx, (B, N, c_in), jnp.float32)

    # Random directed adjacency with self-connections (values in {0, 1})
    adj = (jax.random.uniform(kadj, (B, N, N)) < 0.3).astype(jnp.float32)
    eye = jnp.eye(N, dtype=jnp.float32)[None, :, :]
    adj = jnp.maximum(adj, eye)

    # Deterministic parameter init (synthetic; weights stored as (in, out))
    w1 = _xavier_uniform(kw1, c_in, c_hidden)
    b1 = jax.random.uniform(kb1, (1, c_hidden), jnp.float32, -0.1, 0.1)
    w2 = _xavier_uniform(kw2, c_hidden, c_out)
    b2 = jax.random.uniform(kb2, (1, c_out), jnp.float32, -0.1, 0.1)

    out = gnn_forward(x, adj, w1, b1, w2, b2)
    out = jax.block_until_ready(out)

    ref = _reference_forward(x, adj, w1, b1, w2, b2)
    np.testing.assert_allclose(np.asarray(out), np.asarray(ref), rtol=1e-5, atol=1e-5)

    print("KERNEL_OK")
</pallas_src>

<mosaic_0001>
module attributes {stable_mosaic.version = 11 : i64} {
  func.func @gnn_gcn_kernel(%arg0: i32, %arg1: memref<2x16x4xf32, #tpu.memory_space<vmem>>, %arg2: memref<2x16x16xf32, #tpu.memory_space<vmem>>, %arg3: memref<4x32xf32, #tpu.memory_space<vmem>>, %arg4: memref<1x32xf32, #tpu.memory_space<vmem>>, %arg5: memref<32x8xf32, #tpu.memory_space<vmem>>, %arg6: memref<1x8xf32, #tpu.memory_space<vmem>>, %arg7: memref<2x16x8xf32, #tpu.memory_space<vmem>>) attributes {dimension_semantics = [#tpu.dimension_semantics<parallel>], iteration_bounds = array<i64: 1>, scalar_prefetch = 0 : i64, scratch_operands = 0 : i64, tpu.core_type = #tpu.core_type<tc>, window_params = [{transform_indices = @transform_0, window_bounds = array<i64: 2, 16, 4>}, {transform_indices = @transform_1, window_bounds = array<i64: 2, 16, 16>}, {pipeline_mode = #tpu.pipeline_mode<synchronous>, transform_indices = @transform_2, window_bounds = array<i64: 4, 32>}, {pipeline_mode = #tpu.pipeline_mode<synchronous>, transform_indices = @transform_3, window_bounds = array<i64: 1, 32>}, {pipeline_mode = #tpu.pipeline_mode<synchronous>, transform_indices = @transform_4, window_bounds = array<i64: 32, 8>}, {pipeline_mode = #tpu.pipeline_mode<synchronous>, transform_indices = @transform_5, window_bounds = array<i64: 1, 8>}, {transform_indices = @transform_6, window_bounds = array<i64: 2, 16, 8>}]} {
    %c0 = arith.constant 0 : index
    %c0_0 = arith.constant 0 : index
    %c0_1 = arith.constant 0 : index
    %0 = vector.load %arg2[%c0, %c0_0, %c0_1] : memref<2x16x16xf32, #tpu.memory_space<vmem>>, vector<2x16x16xf32>
    %c0_2 = arith.constant 0 : index
    %c0_3 = arith.constant 0 : index
    %c0_4 = arith.constant 0 : index
    %1 = vector.load %arg1[%c0_2, %c0_3, %c0_4] : memref<2x16x4xf32, #tpu.memory_space<vmem>>, vector<2x16x4xf32>
    %cst = arith.constant dense<0.000000e+00> : vector<2x16xf32>
    %2 = vector.multi_reduction <add>, %0, %cst [2] : vector<2x16x16xf32> to vector<2x16xf32>
    %3 = vector.shape_cast %2 : vector<2x16xf32> to vector<2x16x1xf32>
    %4 = tpu.reciprocal %3 : vector<2x16x1xf32> -> vector<2x16x1xf32>
    "tpu.trace_start"() <{level = 10 : i32, message = "bnm,bmc->bnc"}> : () -> ()
    %cst_5 = arith.constant dense<0.000000e+00> : vector<2x16x4xf32>
    %5 = tpu.matmul %0, %1, %cst_5 {dimension_numbers = #tpu.dot_dimension_numbers<[2], [1], [1], [2], [0, 0, 0, 1, 1, 2], [0], [0]>} : vector<2x16x16xf32>, vector<2x16x4xf32>, vector<2x16x4xf32> -> vector<2x16x4xf32>
    "tpu.trace_stop"() : () -> ()
    %6 = vector.broadcast %4 : vector<2x16x1xf32> to vector<2x16x4xf32>
    %7 = arith.mulf %5, %6 : vector<2x16x4xf32>
    %8 = vector.shape_cast %7 : vector<2x16x4xf32> to vector<32x4xf32>
    %c0_6 = arith.constant 0 : index
    %c0_7 = arith.constant 0 : index
    %9 = vector.load %arg3[%c0_6, %c0_7] : memref<4x32xf32, #tpu.memory_space<vmem>>, vector<4x32xf32>
    %cst_8 = arith.constant dense<0.000000e+00> : vector<32x32xf32>
    %10 = tpu.matmul %8, %9, %cst_8 {dimension_numbers = #tpu.dot_dimension_numbers<[1], [0], [0], [1], [0, 0, 1, 1], [], []>} : vector<32x4xf32>, vector<4x32xf32>, vector<32x32xf32> -> vector<32x32xf32>
    %c0_9 = arith.constant 0 : index
    %c0_10 = arith.constant 0 : index
    %11 = vector.load %arg4[%c0_9, %c0_10] : memref<1x32xf32, #tpu.memory_space<vmem>>, vector<1x32xf32>
    %12 = vector.broadcast %11 : vector<1x32xf32> to vector<32x32xf32>
    %13 = arith.addf %10, %12 : vector<32x32xf32>
    %cst_11 = arith.constant 0.000000e+00 : f32
    %14 = vector.broadcast %cst_11 : f32 to vector<32x32xf32>
    %15 = arith.maximumf %13, %14 : vector<32x32xf32>
    %16 = vector.shape_cast %15 : vector<32x32xf32> to vector<2x16x32xf32>
    "tpu.trace_start"() <{level = 10 : i32, message = "bnm,bmc->bnc"}> : () -> ()
    %cst_12 = arith.constant dense<0.000000e+00> : vector<2x16x32xf32>
    %17 = tpu.matmul %0, %16, %cst_12 {dimension_numbers = #tpu.dot_dimension_numbers<[2], [1], [1], [2], [0, 0, 0, 1, 1, 2], [0], [0]>} : vector<2x16x16xf32>, vector<2x16x32xf32>, vector<2x16x32xf32> -> vector<2x16x32xf32>
    "tpu.trace_stop"() : () -> ()
    %18 = vector.broadcast %4 : vector<2x16x1xf32> to vector<2x16x32xf32>
    %19 = arith.mulf %17, %18 : vector<2x16x32xf32>
    %20 = vector.shape_cast %19 : vector<2x16x32xf32> to vector<32x32xf32>
    %c0_13 = arith.constant 0 : index
    %c0_14 = arith.constant 0 : index
    %21 = vector.load %arg5[%c0_13, %c0_14] : memref<32x8xf32, #tpu.memory_space<vmem>>, vector<32x8xf32>
    %cst_15 = arith.constant dense<0.000000e+00> : vector<32x8xf32>
    %22 = tpu.matmul %20, %21, %cst_15 {dimension_numbers = #tpu.dot_dimension_numbers<[1], [0], [0], [1], [0, 0, 1, 1], [], []>} : vector<32x32xf32>, vector<32x8xf32>, vector<32x8xf32> -> vector<32x8xf32>
    %c0_16 = arith.constant 0 : index
    %c0_17 = arith.constant 0 : index
    %23 = vector.load %arg6[%c0_16, %c0_17] : memref<1x8xf32, #tpu.memory_space<vmem>>, vector<1x8xf32>
    %24 = vector.broadcast %23 : vector<1x8xf32> to vector<32x8xf32>
    %25 = arith.addf %22, %24 : vector<32x8xf32>
    %26 = vector.shape_cast %25 : vector<32x8xf32> to vector<2x16x8xf32>
    %c0_18 = arith.constant 0 : index
    %c0_19 = arith.constant 0 : index
    %c0_20 = arith.constant 0 : index
    %27 = vector.load %arg7[%c0_18, %c0_19, %c0_20] : memref<2x16x8xf32, #tpu.memory_space<vmem>>, vector<2x16x8xf32>
    tpu.vector_store %arg7[%c0_18, %c0_19, %c0_20], %26 {strides = array<i32>} : memref<2x16x8xf32, #tpu.memory_space<vmem>>, vector<2x16x8xf32>,
    return
  }
  func.func @transform_0(%arg0: i32) -> (i32, i32, i32) {
    %c0_i32 = arith.constant 0 : i32
    %c0_i32_0 = arith.constant 0 : i32
    %c0_i32_1 = arith.constant 0 : i32
    return %arg0, %c0_i32, %c0_i32_0 : i32, i32, i32
  }
  func.func @transform_1(%arg0: i32) -> (i32, i32, i32) {
    %c0_i32 = arith.constant 0 : i32
    %c0_i32_0 = arith.constant 0 : i32
    %c0_i32_1 = arith.constant 0 : i32
    return %arg0, %c0_i32, %c0_i32_0 : i32, i32, i32
  }
  func.func @transform_2(%arg0: i32) -> (i32, i32) {
    %c0_i32 = arith.constant 0 : i32
    %c0_i32_0 = arith.constant 0 : i32
    %c0_i32_1 = arith.constant 0 : i32
    return %c0_i32, %c0_i32_0 : i32, i32
  }
  func.func @transform_3(%arg0: i32) -> (i32, i32) {
    %c0_i32 = arith.constant 0 : i32
    %c0_i32_0 = arith.constant 0 : i32
    %c0_i32_1 = arith.constant 0 : i32
    return %c0_i32, %c0_i32_0 : i32, i32
  }
  func.func @transform_4(%arg0: i32) -> (i32, i32) {
    %c0_i32 = arith.constant 0 : i32
    %c0_i32_0 = arith.constant 0 : i32
    %c0_i32_1 = arith.constant 0 : i32
    return %c0_i32, %c0_i32_0 : i32, i32
  }
  func.func @transform_5(%arg0: i32) -> (i32, i32) {
    %c0_i32 = arith.constant 0 : i32
    %c0_i32_0 = arith.constant 0 : i32
    %c0_i32_1 = arith.constant 0 : i32
    return %c0_i32, %c0_i32_0 : i32, i32
  }
  func.func @transform_6(%arg0: i32) -> (i32, i32, i32) {
    %c0_i32 = arith.constant 0 : i32
    %c0_i32_0 = arith.constant 0 : i32
    %c0_i32_1 = arith.constant 0 : i32
    return %arg0, %c0_i32, %c0_i32_0 : i32, i32, i32
  }
}

</mosaic_0001>

<llo_original>
// kernel: tpu_custom_call.1
$region0: #{tpu_custom_call.1}
  #allocation0 [shape = 'u32[]', space=smem, size = 0x4, offset = 0x4, fixed_abs, tag = 'smem constant byte address 0x4 - core index']
  #allocation1 [shape = 'u32[72,128]{1,0:T(1,128)}', space=vmem, size = 0x9000, scoped, tag = 'internal scratch']
  %s0 = inlined_call_operand.vmem [shape: f32[2,16,4], index: 0, kind: input, shape index: {}]
  %s1 = inlined_call_operand.vmem [shape: f32[2,16,16], index: 1, kind: input, shape index: {}]
  %s2 = inlined_call_operand.vmem [shape: f32[4,32], index: 2, kind: input, shape index: {}]
  %s3 = inlined_call_operand.vmem [shape: f32[1,32], index: 3, kind: input, shape index: {}]
  %s4 = inlined_call_operand.vmem [shape: f32[32,8], index: 4, kind: input, shape index: {}]
  %s5 = inlined_call_operand.vmem [shape: f32[1,8], index: 5, kind: input, shape index: {}]
  %s6 = inlined_call_operand.vmem [shape: f32[2,16,8], index: 6, kind: output, shape index: {}]
  %s7 = sld [smem:[#allocation0]]
  $region34: #{tpu_custom_call.1} parent=0
    _
  %s9 = ssub.s32 1, %s7
  %s10 = scalar_select 0, %s9, %s7
  // Predicated region
  $region2: #{tpu_custom_call.1} parent=0 // pred_check
    _
  $region3: #{tpu_custom_call.1} parent=0 // pred_check_branch
    %12 = sbr.rel (0) target = $region5
  $region4: #{tpu_custom_call.1} parent=0 // pred_region
    _
  $region5: #{tpu_custom_call.1} parent=0 // pred_fallthru
    _
  // Predicated region
  $region6: #{tpu_custom_call.1} parent=0 // pred_check
    _
  $region7: #{tpu_custom_call.1} parent=0 // pred_check_branch
    %14 = sbr.rel (0) target = $region9
  $region8: #{tpu_custom_call.1} parent=0 // pred_region
    _
  $region9: #{tpu_custom_call.1} parent=0 // pred_fallthru
    _
  // Predicated region
  $region10: #{tpu_custom_call.1} parent=0 // pred_check
    _
  $region11: #{tpu_custom_call.1} parent=0 // pred_check_branch
    %16 = sbr.rel (0) target = $region13
  $region12: #{tpu_custom_call.1} parent=0 // pred_region
    _
  $region13: #{tpu_custom_call.1} parent=0 // pred_fallthru
    _
  // Predicated region
  $region14: #{tpu_custom_call.1} parent=0 // pred_check
    _
  $region15: #{tpu_custom_call.1} parent=0 // pred_check_branch
    %18 = sbr.rel (0) target = $region17
  $region16: #{tpu_custom_call.1} parent=0 // pred_region
    _
  $region17: #{tpu_custom_call.1} parent=0 // pred_fallthru
    _
  // Predicated region
  $region18: #{tpu_custom_call.1} parent=0 // pred_check
    _
  $region19: #{tpu_custom_call.1} parent=0 // pred_check_branch
    %20 = sbr.rel (0) target = $region21
  $region20: #{tpu_custom_call.1} parent=0 // pred_region
    _
  $region21: #{tpu_custom_call.1} parent=0 // pred_fallthru
    _
  // Predicated region
  $region22: #{tpu_custom_call.1} parent=0 // pred_check
    _
  $region23: #{tpu_custom_call.1} parent=0 // pred_check_branch
    %22 = sbr.rel (0) target = $region25
  $region24: #{tpu_custom_call.1} parent=0 // pred_region
    _
  $region25: #{tpu_custom_call.1} parent=0 // pred_fallthru
    _
  %v23 = vld [vmem:[%s1] sm:$0xff]
  %v24 = vld [vmem:[%s1 + $0x8] sm:$0xff]
  %v25 = vld [vmem:[%s1 + $0x10] sm:$0xff]
  %v26 = vld [vmem:[%s1 + $0x18] sm:$0xff]
  %v27 = vld [vmem:[%s0] sm:$0xff]
  %v28 = vld [vmem:[%s0 + $0x8] sm:$0xff]
  %v29 = vld [vmem:[%s0 + $0x10] sm:$0xff]
  %v30 = vld [vmem:[%s0 + $0x18] sm:$0xff]
  %vm31 = vcmask 130048
  %v32 = vsel %vm31, %v23, 0.0
  %33 = vadd.xlane.f32.xlu0 %v32
  %v34 = vpop.xlane.xlu0 %33
  %v35 = vsel %vm31, %v24, 0.0
  %36 = vadd.xlane.f32.xlu0 %v35
  %v37 = vpop.xlane.xlu0 %36
  %v38 = vsel %vm31, %v25, 0.0
  %39 = vadd.xlane.f32.xlu0 %v38
  %v40 = vpop.xlane.xlu0 %39
  %v41 = vsel %vm31, %v26, 0.0
  %42 = vadd.xlane.f32.xlu0 %v41
  %v43 = vpop.xlane.xlu0 %42
  %v44 = vrcp.pop %v34
  %v45 = vmul.f32 %v34, %v44
  %v46 = vsub.f32 1.0, %v45
  %v47 = vmul.f32 %v44, %v46
  %v48 = vadd.f32 %v44, %v47
  %vm49 = vweird.f32 %v34
  %vm50 = vweird.f32 %v44
  %vm51 = vmor %vm49, %vm50
  %v52 = vsel %vm51, %v44, %v48
  %v53 = vand.u32 2147483647, %v34
  %vm54 = vcmp.eq.f32.partialorder %v53, 8.507059e+37
  %v55 = vand.u32 %v34, 2147483648
  %v56 = vor.u32 1.1754944e-38, %v55
  %v57 = vsel %vm54, %v56, %v52
  %v58 = vrcp.pop %v37
  %v59 = vmul.f32 %v37, %v58
  %v60 = vsub.f32 1.0, %v59
  %v61 = vmul.f32 %v58, %v60
  %v62 = vadd.f32 %v58, %v61
  %vm63 = vweird.f32 %v37
  %vm64 = vweird.f32 %v58
  %vm65 = vmor %vm63, %vm64
  %v66 = vsel %vm65, %v58, %v62
  %v67 = vand.u32 2147483647, %v37
  %vm68 = vcmp.eq.f32.partialorder %v67, 8.507059e+37
  %v69 = vand.u32 %v37, 2147483648
  %v70 = vor.u32 1.1754944e-38, %v69
  %v71 = vsel %vm68, %v70, %v66
  %v72 = vrcp.pop %v40
  %v73 = vmul.f32 %v40, %v72
  %v74 = vsub.f32 1.0, %v73
  %v75 = vmul.f32 %v72, %v74
  %v76 = vadd.f32 %v72, %v75
  %vm77 = vweird.f32 %v40
  %vm78 = vweird.f32 %v72
  %vm79 = vmor %vm77, %vm78
  %v80 = vsel %vm79, %v72, %v76
  %v81 = vand.u32 2147483647, %v40
  %vm82 = vcmp.eq.f32.partialorder %v81, 8.507059e+37
  %v83 = vand.u32 %v40, 2147483648
  %v84 = vor.u32 1.1754944e-38, %v83
  %v85 = vsel %vm82, %v84, %v80
  %v86 = vrcp.pop %v43
  %v87 = vmul.f32 %v43, %v86
  %v88 = vsub.f32 1.0, %v87
  %v89 = vmul.f32 %v86, %v88
  %v90 = vadd.f32 %v86, %v89
  %vm91 = vweird.f32 %v43
  %vm92 = vweird.f32 %v86
  %vm93 = vmor %vm91, %vm92
  %v94 = vsel %vm93, %v86, %v90
  %v95 = vand.u32 2147483647, %v43
  %vm96 = vcmp.eq.f32.partialorder %v95, 8.507059e+37
  %v97 = vand.u32 %v43, 2147483648
  %v98 = vor.u32 1.1754944e-38, %v97
  %v99 = vsel %vm96, %v98, %v94
  %v101 = vsel %vm31, %v23, 0
  %v104 = vsel %vm31, %v24, 0
  %106 = vmatpush.msra.mxu0 0.0
  %107 = vmatpush.msra.mxu0 0.0
  %108 = vmatpush.msra.mxu0 0.0
  %109 = vmatpush.msra.mxu0 0.0
  %110 = vmatpush.msra.mxu0 0.0
  %111 = vmatpush.msra.mxu0 0.0
  %112 = vmatpush.msra.mxu0 0.0
  %113 = vmatpush.msra.mxu0 0.0
  %114 = vmatpush.msra.mxu0 0.0
  %115 = vmatpush.msra.mxu0 0.0
  %116 = vmatpush.msra.mxu0 0.0
  %117 = vmatpush.msra.mxu0 0.0
  %118 = vmatpush.msra.mxu0 0.0
  %119 = vmatpush.msra.mxu0 0.0
  %120 = vmatpush.msra.mxu0 %v28
  %121 = vmatpush.msra.mxu0 %v27
  %122 = vmatmul.f32.gmra.mxu0 %v101
  %v123 = vpop.f32.mrf.mxu0
  %v124 = vadd.f32 0.0, %v123
  %125 = vmatmul.f32.gmra.mxu0 %v104
  %v126 = vpop.f32.mrf.mxu0
  %v127 = vadd.f32 0.0, %v126
  %128 = vdwg.mxu0
  %v130 = vsel %vm31, %v25, 0
  %v133 = vsel %vm31, %v26, 0
  %135 = vmatpush.msra.mxu0 0.0
  %136 = vmatpush.msra.mxu0 0.0
  %137 = vmatpush.msra.mxu0 0.0
  %138 = vmatpush.msra.mxu0 0.0
  %139 = vmatpush.msra.mxu0 0.0
  %140 = vmatpush.msra.mxu0 0.0
  %141 = vmatpush.msra.mxu0 0.0
  %142 = vmatpush.msra.mxu0 0.0
  %143 = vmatpush.msra.mxu0 0.0
  %144 = vmatpush.msra.mxu0 0.0
  %145 = vmatpush.msra.mxu0 0.0
  %146 = vmatpush.msra.mxu0 0.0
  %147 = vmatpush.msra.mxu0 0.0
  %148 = vmatpush.msra.mxu0 0.0
  %149 = vmatpush.msra.mxu0 %v30
  %150 = vmatpush.msra.mxu0 %v29
  %151 = vmatmul.f32.gmra.mxu0 %v130
  %v152 = vpop.f32.mrf.mxu0
  %v153 = vadd.f32 0.0, %v152
  %154 = vmatmul.f32.gmra.mxu0 %v133
  %v155 = vpop.f32.mrf.mxu0
  %v156 = vadd.f32 0.0, %v155
  %157 = vdwg.mxu0
  %v158 = vmul.f32 %v124, %v57
  %v159 = vmul.f32 %v127, %v71
  %v160 = vmul.f32 %v153, %v85
  %v161 = vmul.f32 %v156, %v99
  %v162 = vld [vmem:[%s2] sm:$0xf]
  %v163 = vld [vmem:[%s3] sm:$0x1]
  %v165 = vperm.slane %v163, 0
  %vm167 = vcmask 31744
  %v169 = vsel %vm167, %v158, 0
  %v172 = vsel %vm167, %v159, 0
  %v175 = vsel %vm167, %v160, 0
  %v178 = vsel %vm167, %v161, 0
  %vm180 = vcmask 1043456
  %v182 = vsel %vm180, %v162, 0
  %184 = vmatpush.msra.mxu0 0.0
  %185 = vmatpush.msra.mxu0 0.0
  %186 = vmatpush.msra.mxu0 0.0
  %187 = vmatpush.msra.mxu0 0.0
  %188 = vmatpush.msra.mxu0 0.0
  %189 = vmatpush.msra.mxu0 0.0
  %190 = vmatpush.msra.mxu0 0.0
  %191 = vmatpush.msra.mxu0 0.0
  %192 = vmatpush.msra.mxu0 0.0
  %193 = vmatpush.msra.mxu0 0.0
  %194 = vmatpush.msra.mxu0 0.0
  %195 = vmatpush.msra.mxu0 0.0
  %196 = vmatpush.msra.mxu0 0.0
  %197 = vmatpush.msra.mxu0 0.0
  %198 = vmatpush.msra.mxu0 0.0
  %199 = vmatpush.msra.mxu0 %v182
  %200 = vmatmul.f32.gmra.mxu0 %v169
  %v201 = vpop.f32.mrf.mxu0
  %v202 = vadd.f32 %v165, %v201
  %203 = vmatmul.f32.gmra.mxu0 %v172
  %v204 = vpop.f32.mrf.mxu0
  %v205 = vadd.f32 %v165, %v204
  %206 = vmatmul.f32.gmra.mxu0 %v175
  %v207 = vpop.f32.mrf.mxu0
  %v208 = vadd.f32 %v165, %v207
  %209 = vmatmul.f32.gmra.mxu0 %v178
  %v210 = vpop.f32.mrf.mxu0
  %v211 = vadd.f32 %v165, %v210
  %212 = vdwg.mxu0
  %v213 = vmax.f32 %v202, 0.0
  %v214 = vmax.f32 %v205, 0.0
  %v215 = vmax.f32 %v208, 0.0
  %v216 = vmax.f32 %v211, 0.0
  %217 = vmatpush.msra.mxu0 0.0
  %218 = vmatpush.msra.mxu0 0.0
  %219 = vmatpush.msra.mxu0 0.0
  %220 = vmatpush.msra.mxu0 0.0
  %221 = vmatpush.msra.mxu0 0.0
  %222 = vmatpush.msra.mxu0 0.0
  %223 = vmatpush.msra.mxu0 0.0
  %224 = vmatpush.msra.mxu0 0.0
  %225 = vmatpush.msra.mxu0 0.0
  %226 = vmatpush.msra.mxu0 0.0
  %227 = vmatpush.msra.mxu0 0.0
  %228 = vmatpush.msra.mxu0 0.0
  %229 = vmatpush.msra.mxu0 0.0
  %230 = vmatpush.msra.mxu0 0.0
  %231 = vmatpush.msra.mxu0 %v214
  %232 = vmatpush.msra.mxu0 %v213
  %233 = vmatmul.f32.gmra.mxu0 %v101
  %v234 = vpop.f32.mrf.mxu0
  %v235 = vadd.f32 0.0, %v234
  %236 = vmatmul.f32.gmra.mxu0 %v104
  %v237 = vpop.f32.mrf.mxu0
  %v238 = vadd.f32 0.0, %v237
  %239 = vdwg.mxu0
  %240 = vmatpush.msra.mxu0 0.0
  %241 = vmatpush.msra.mxu0 0.0
  %242 = vmatpush.msra.mxu0 0.0
  %243 = vmatpush.msra.mxu0 0.0
  %244 = vmatpush.msra.mxu0 0.0
  %245 = vmatpush.msra.mxu0 0.0
  %246 = vmatpush.msra.mxu0 0.0
  %247 = vmatpush.msra.mxu0 0.0
  %248 = vmatpush.msra.mxu0 0.0
  %249 = vmatpush.msra.mxu0 0.0
  %250 = vmatpush.msra.mxu0 0.0
  %251 = vmatpush.msra.mxu0 0.0
  %252 = vmatpush.msra.mxu0 0.0
  %253 = vmatpush.msra.mxu0 0.0
  %254 = vmatpush.msra.mxu0 %v216
  %255 = vmatpush.msra.mxu0 %v215
  %256 = vmatmul.f32.gmra.mxu0 %v130
  %v257 = vpop.f32.mrf.mxu0
  %v258 = vadd.f32 0.0, %v257
  %259 = vmatmul.f32.gmra.mxu0 %v133
  %v260 = vpop.f32.mrf.mxu0
  %v261 = vadd.f32 0.0, %v260
  %262 = vdwg.mxu0
  %v263 = vmul.f32 %v235, %v57
  %v264 = vmul.f32 %v238, %v71
  %v265 = vmul.f32 %v258, %v85
  %v266 = vmul.f32 %v261, %v99
  %v267 = vld [vmem:[%s4] sm:$0xff]
  %v268 = vld [vmem:[%s4 + $0x8] sm:$0xff]
  %v269 = vld [vmem:[%s4 + $0x10] sm:$0xff]
  %v270 = vld [vmem:[%s4 + $0x18] sm:$0xff]
  %v271 = vld [vmem:[%s5] sm:$0x1]
  %v273 = vperm.slane %v271, 0
  %vm275 = vcmask 261120
  %v277 = vsel %vm275, %v263, 0
  %v280 = vsel %vm275, %v264, 0
  %v283 = vsel %vm275, %v265, 0
  %v286 = vsel %vm275, %v266, 0
  %288 = vmatpush.msra.mxu0 0.0
  %289 = vmatpush.msra.mxu0 0.0
  %290 = vmatpush.msra.mxu0 0.0
  %291 = vmatpush.msra.mxu0 0.0
  %292 = vmatpush.msra.mxu0 0.0
  %293 = vmatpush.msra.mxu0 0.0
  %294 = vmatpush.msra.mxu0 0.0
  %295 = vmatpush.msra.mxu0 0.0
  %296 = vmatpush.msra.mxu0 0.0
  %297 = vmatpush.msra.mxu0 0.0
  %298 = vmatpush.msra.mxu0 0.0
  %299 = vmatpush.msra.mxu0 0.0
  %300 = vmatpush.msra.mxu0 %v270
  %301 = vmatpush.msra.mxu0 %v269
  %302 = vmatpush.msra.mxu0 %v268
  %303 = vmatpush.msra.mxu0 %v267
  %304 = vmatmul.f32.gmra.mxu0 %v277
  %v305 = vpop.f32.mrf.mxu0
  %v306 = vadd.f32 %v273, %v305
  %307 = vmatmul.f32.gmra.mxu0 %v280
  %v308 = vpop.f32.mrf.mxu0
  %v309 = vadd.f32 %v273, %v308
  %310 = vmatmul.f32.gmra.mxu0 %v283
  %v311 = vpop.f32.mrf.mxu0
  %v312 = vadd.f32 %v273, %v311
  %313 = vmatmul.f32.gmra.mxu0 %v286
  %v314 = vpop.f32.mrf.mxu0
  %v315 = vadd.f32 %v273, %v314
  %316 = vdwg.mxu0
  %vm317 = vcmask 64512
  %318 = vst.msk [vmem:[%s6] sm:$0xff] %vm317, %v306
  %319 = vst.msk [vmem:[%s6 + $0x8] sm:$0xff] %vm317, %v309
  %320 = vst.msk [vmem:[%s6 + $0x10] sm:$0xff] %vm317, %v312
  %321 = vst.msk [vmem:[%s6 + $0x18] sm:$0xff] %vm317, %v315
  // Predicated region
  $region26: #{tpu_custom_call.1} parent=0 // pred_check
    _
  $region27: #{tpu_custom_call.1} parent=0 // pred_check_branch
    %323 = sbr.rel (0) target = $region29
  $region28: #{tpu_custom_call.1} parent=0 // pred_region
    _
  $region29: #{tpu_custom_call.1} parent=0 // pred_fallthru
    _
  // Predicated region
  $region30: #{tpu_custom_call.1} parent=0 // pred_check
    _
  $region31: #{tpu_custom_call.1} parent=0 // pred_check_branch
    %325 = sbr.rel (0) target = $region33
  $region32: #{tpu_custom_call.1} parent=0 // pred_region
    _
  $region33: #{tpu_custom_call.1} parent=0 // pred_fallthru
    _

</llo_original>
